<compile_context>
chip_gen: v5e
topology: v5e:2x2
jax: 0.10.0
libtpu: 0.0.40
codegen_flags: <defaults>
</compile_context>

<pallas_src>
import functools
import math

import jax
import jax.numpy as jnp
from jax.experimental import pallas as pl
from jax.experimental.pallas import tpu as pltpu


def _round_up(v, m):
    return (v + m - 1) // m * m


def _apply_activation(v, activation):
    if activation == "relu":
        return jnp.maximum(v, 0.0)
    if activation == "leaky_relu":
        return jnp.where(v > 0, v, 0.01 * v)
    if activation == "elu":
        return jnp.where(v > 0, v, jnp.expm1(v))
    raise ValueError(f"unknown activation {activation!r}")


# ----------------------------------------------------------------- kernel ----
def _fused_network_kernel(x_ref, w_ref, b_ref, o_ref, *, num_layers, activation,
                          x_dim, noise_dim, hidden_pad, noise_pad, out_dim):
    """Entire NoiseInjectionNetwork forward for one batch tile.

    x_ref : (Bt, x_dim + noise_dim)
    w_ref : (L, hidden_pad + noise_pad, hidden_pad)  packed, zero-padded weights
            rows [0, h_in_l)                          -> hidden-input rows
            rows [hidden_pad, hidden_pad + noise_dim) -> noise-input rows
    b_ref : (L, 1, hidden_pad)                        packed, zero-padded biases
    o_ref : (Bt, out_dim)
    """
    x = x_ref[...]
    bt = x.shape[0]

    # Split once, in-kernel (static lane slices -> no extra XLA op / input DMA).
    hidden = x[:, :x_dim]
    noise = x[:, x_dim:]

    # Pad once to the fixed lane-aligned state layout.
    if hidden_pad > x_dim:
        hidden = jnp.concatenate(
            [hidden, jnp.zeros((bt, hidden_pad - x_dim), jnp.float32)], axis=1)
    if noise_pad > noise_dim:
        noise = jnp.concatenate(
            [noise, jnp.zeros((bt, noise_pad - noise_dim), jnp.float32)], axis=1)

    # One MXU dot per layer on the packed state [hidden | noise].
    for l in range(num_layers):
        state = jnp.concatenate([hidden, noise], axis=1)   # (Bt, hp + np), aligned
        acc = jnp.dot(state, w_ref[l], preferred_element_type=jnp.float32)
        acc = acc + b_ref[l]                               # (1, hp) broadcast
        if l < num_layers - 1:                             # no act on output layer
            acc = _apply_activation(acc, activation)       # act(0)=0: padding stays 0
        hidden = acc                                       # (Bt, hidden_pad)

    o_ref[...] = hidden[:, :out_dim].astype(o_ref.dtype)


# ---------------------------------------------------------------- wrapper ----
def noise_injection_forward(x, w_pack, b_pack, *, x_dim, noise_dim, activation,
                            out_dim, hidden_pad, noise_pad, num_layers):
    B, in_dim = x.shape

    # Batch tiling: small batches run as a single block; large batches are tiled
    # at 512 rows ("parallel" grid axis -> pipelining + v7x megacore sharding).
    bb = B if B <= 512 else 512
    nb = pl.cdiv(B, bb)

    kernel = functools.partial(
        _fused_network_kernel, num_layers=num_layers, activation=activation,
        x_dim=x_dim, noise_dim=noise_dim, hidden_pad=hidden_pad,
        noise_pad=noise_pad, out_dim=out_dim)

    flops = 2 * B * num_layers * (hidden_pad + noise_pad) * hidden_pad
    transcendentals = B * (num_layers - 1) * hidden_pad if activation == "elu" else 0
    bytes_accessed = 4 * (x.size + B * out_dim + w_pack.size + b_pack.size)

    return pl.pallas_call(
        kernel,
        out_shape=jax.ShapeDtypeStruct((B, out_dim), jnp.float32),
        grid=(nb,),
        in_specs=[
            pl.BlockSpec((bb, in_dim), lambda i: (i, 0)),
            pl.BlockSpec(w_pack.shape, lambda i: (0, 0, 0)),   # constant -> DMA once
            pl.BlockSpec(b_pack.shape, lambda i: (0, 0, 0)),   # constant -> DMA once
        ],
        out_specs=pl.BlockSpec((bb, out_dim), lambda i: (i, 0)),
        compiler_params=pltpu.CompilerParams(
            dimension_semantics=("parallel",)),
        cost_estimate=pl.CostEstimate(
            flops=flops, transcendentals=transcendentals,
            bytes_accessed=bytes_accessed),
    )(x, w_pack, b_pack)


# ----------------------------------------------------------------- module ----
class NoiseInjectionNetworkPallas:
    """JAX/Pallas port of NoiseInjectionNetwork (fully fused forward)."""

    def __init__(self, spec, key):
        self.activation = spec["activation"]
        self.x_dim = spec["x_dim"]
        self.noise_dim = spec["other_dim"]
        hidden_layers = list(spec["hidden_layers"])
        self.out_dim = spec["out_dim"]

        # (fan_in, fan_out) per layer, matching create_ff_section + output layer.
        dims = []
        prev = self.x_dim
        for to_dim in hidden_layers:
            dims.append((prev + self.noise_dim, to_dim))
            prev = to_dim
        if hidden_layers:
            dims.append((hidden_layers[-1] + self.noise_dim, self.out_dim))
        else:
            # NOTE(documented divergence): with empty hidden_layers PyTorch sizes
            # the output layer with fan_in = x_dim + 2*noise_dim but forward()
            # only feeds x_dim + noise_dim features (it would raise).  We size it
            # to what forward() actually produces.
            dims.append((self.x_dim + self.noise_dim, self.out_dim))
        self.num_layers = len(dims)

        # Packed, lane-aligned parameter slabs (2 kernel inputs for the whole net).
        widths = [self.x_dim] + [fo for _, fo in dims]
        self.hidden_pad = _round_up(max(widths), 128)
        self.noise_pad = _round_up(self.noise_dim, 128)
        kp = self.hidden_pad + self.noise_pad

        w_pack = jnp.zeros((self.num_layers, kp, self.hidden_pad), jnp.float32)
        b_pack = jnp.zeros((self.num_layers, 1, self.hidden_pad), jnp.float32)
        self.raw_params = []     # unpacked copies, only for the pure-JAX reference
        for l, (fan_in, fan_out) in enumerate(dims):
            key, wk, bk = jax.random.split(key, 3)
            bound = 1.0 / math.sqrt(fan_in)
            w = jax.random.uniform(wk, (fan_in, fan_out), jnp.float32, -bound, bound)
            b = jax.random.uniform(bk, (fan_out,), jnp.float32, -bound, bound)
            self.raw_params.append((w, b))
            h_in = fan_in - self.noise_dim
            w_pack = w_pack.at[l, :h_in, :fan_out].set(w[:h_in])
            w_pack = w_pack.at[
                l, self.hidden_pad:self.hidden_pad + self.noise_dim, :fan_out
            ].set(w[h_in:])
            b_pack = b_pack.at[l, 0, :fan_out].set(b)
        self.w_pack = w_pack
        self.b_pack = b_pack

        self._forward = jax.jit(functools.partial(
            noise_injection_forward,
            x_dim=self.x_dim, noise_dim=self.noise_dim,
            activation=self.activation, out_dim=self.out_dim,
            hidden_pad=self.hidden_pad, noise_pad=self.noise_pad,
            num_layers=self.num_layers))

    def __call__(self, x):
        return self._forward(x, self.w_pack, self.b_pack)

    # pure-JAX reference for correctness checking
    def reference(self, x):
        acts = {"relu": jax.nn.relu,
                "leaky_relu": lambda v: jax.nn.leaky_relu(v, 0.01),
                "elu": jax.nn.elu}
        act = acts[self.activation]
        hidden = x[:, :self.x_dim]
        noise = x[:, self.x_dim:]
        n = len(self.raw_params)
        for i, (w, b) in enumerate(self.raw_params):
            inp = jnp.concatenate([hidden, noise], axis=1)
            y = inp @ w + b
            if i < n - 1:
                y = act(y)
            hidden = y
        return hidden


# -------------------------------------------------------------------- main ---
if __name__ == "__main__":
    spec = {
        "activation": "relu",
        "x_dim": 24,
        "other_dim": 8,          # noise_dim; input feature dim = 24 + 8 = 32
        "hidden_layers": [32, 32],
        "out_dim": 16,
    }
    batch = 8

    key = jax.random.PRNGKey(0)
    pkey, xkey = jax.random.split(key)

    net = NoiseInjectionNetworkPallas(spec, pkey)
    x = jax.random.normal(xkey, (batch, spec["x_dim"] + spec["other_dim"]),
                          dtype=jnp.float32)

    out = net(x)
    out = jax.block_until_ready(out)

    ref = net.reference(x)
    assert out.shape == (batch, spec["out_dim"])
    assert jnp.allclose(out, ref, atol=1e-4, rtol=1e-4), (
        f"max abs err {jnp.max(jnp.abs(out - ref))}")

    print("KERNEL_OK")
</pallas_src>

<mosaic_0001>
module attributes {stable_mosaic.version = 11 : i64} {
  func.func @_fused_network_kernel(%arg0: i32, %arg1: memref<8x32xf32, #tpu.memory_space<vmem>>, %arg2: memref<3x256x128xf32, #tpu.memory_space<vmem>>, %arg3: memref<3x1x128xf32, #tpu.memory_space<vmem>>, %arg4: memref<8x16xf32, #tpu.memory_space<vmem>>) attributes {dimension_semantics = [#tpu.dimension_semantics<parallel>], iteration_bounds = array<i64: 1>, scalar_prefetch = 0 : i64, scratch_operands = 0 : i64, tpu.core_type = #tpu.core_type<tc>, window_params = [{transform_indices = @transform_0, window_bounds = array<i64: 8, 32>}, {pipeline_mode = #tpu.pipeline_mode<synchronous>, transform_indices = @transform_1, window_bounds = array<i64: 3, 256, 128>}, {pipeline_mode = #tpu.pipeline_mode<synchronous>, transform_indices = @transform_2, window_bounds = array<i64: 3, 1, 128>}, {transform_indices = @transform_3, window_bounds = array<i64: 8, 16>}]} {
    %c0 = arith.constant 0 : index
    %c0_0 = arith.constant 0 : index
    %0 = vector.load %arg1[%c0, %c0_0] : memref<8x32xf32, #tpu.memory_space<vmem>>, vector<8x32xf32>
    %1 = vector.extract_strided_slice %0 {offsets = [0, 0], sizes = [8, 24], strides = [1, 1]} : vector<8x32xf32> to vector<8x24xf32>
    %2 = vector.extract_strided_slice %0 {offsets = [0, 24], sizes = [8, 8], strides = [1, 1]} : vector<8x32xf32> to vector<8x8xf32>
    %cst = arith.constant 0.000000e+00 : f32
    %3 = vector.broadcast %cst : f32 to vector<8x104xf32>
    %4 = tpu.concatenate %1, %3 in 1 : vector<8x24xf32>, vector<8x104xf32> -> vector<8x128xf32>
    %cst_1 = arith.constant 0.000000e+00 : f32
    %5 = vector.broadcast %cst_1 : f32 to vector<8x120xf32>
    %6 = tpu.concatenate %2, %5 in 1 : vector<8x8xf32>, vector<8x120xf32> -> vector<8x128xf32>
    %7 = tpu.concatenate %4, %6 in 1 : vector<8x128xf32>, vector<8x128xf32> -> vector<8x256xf32>
    %c0_2 = arith.constant 0 : index
    %c0_3 = arith.constant 0 : index
    %c0_4 = arith.constant 0 : index
    %8 = vector.load %arg2[%c0_2, %c0_3, %c0_4] : memref<3x256x128xf32, #tpu.memory_space<vmem>>, vector<1x256x128xf32>
    %9 = vector.shape_cast %8 : vector<1x256x128xf32> to vector<256x128xf32>
    %cst_5 = arith.constant dense<0.000000e+00> : vector<8x128xf32>
    %10 = tpu.matmul %7, %9, %cst_5 {dimension_numbers = #tpu.dot_dimension_numbers<[1], [0], [0], [1], [0, 0, 1, 1], [], []>} : vector<8x256xf32>, vector<256x128xf32>, vector<8x128xf32> -> vector<8x128xf32>
    %c0_6 = arith.constant 0 : index
    %c0_7 = arith.constant 0 : index
    %c0_8 = arith.constant 0 : index
    %11 = vector.load %arg3[%c0_6, %c0_7, %c0_8] : memref<3x1x128xf32, #tpu.memory_space<vmem>>, vector<1x1x128xf32>
    %12 = vector.shape_cast %11 : vector<1x1x128xf32> to vector<1x128xf32>
    %13 = vector.broadcast %12 : vector<1x128xf32> to vector<8x128xf32>
    %14 = arith.addf %10, %13 : vector<8x128xf32>
    %cst_9 = arith.constant 0.000000e+00 : f32
    %15 = vector.broadcast %cst_9 : f32 to vector<8x128xf32>
    %16 = arith.maximumf %14, %15 : vector<8x128xf32>
    %17 = tpu.concatenate %16, %6 in 1 : vector<8x128xf32>, vector<8x128xf32> -> vector<8x256xf32>
    %c1 = arith.constant 1 : index
    %c0_10 = arith.constant 0 : index
    %c0_11 = arith.constant 0 : index
    %18 = vector.load %arg2[%c1, %c0_10, %c0_11] : memref<3x256x128xf32, #tpu.memory_space<vmem>>, vector<1x256x128xf32>
    %19 = vector.shape_cast %18 : vector<1x256x128xf32> to vector<256x128xf32>
    %cst_12 = arith.constant dense<0.000000e+00> : vector<8x128xf32>
    %20 = tpu.matmul %17, %19, %cst_12 {dimension_numbers = #tpu.dot_dimension_numbers<[1], [0], [0], [1], [0, 0, 1, 1], [], []>} : vector<8x256xf32>, vector<256x128xf32>, vector<8x128xf32> -> vector<8x128xf32>
    %c1_13 = arith.constant 1 : index
    %c0_14 = arith.constant 0 : index
    %c0_15 = arith.constant 0 : index
    %21 = vector.load %arg3[%c1_13, %c0_14, %c0_15] : memref<3x1x128xf32, #tpu.memory_space<vmem>>, vector<1x1x128xf32>
    %22 = vector.shape_cast %21 : vector<1x1x128xf32> to vector<1x128xf32>
    %23 = vector.broadcast %22 : vector<1x128xf32> to vector<8x128xf32>
    %24 = arith.addf %20, %23 : vector<8x128xf32>
    %cst_16 = arith.constant 0.000000e+00 : f32
    %25 = vector.broadcast %cst_16 : f32 to vector<8x128xf32>
    %26 = arith.maximumf %24, %25 : vector<8x128xf32>
    %27 = tpu.concatenate %26, %6 in 1 : vector<8x128xf32>, vector<8x128xf32> -> vector<8x256xf32>
    %c2 = arith.constant 2 : index
    %c0_17 = arith.constant 0 : index
    %c0_18 = arith.constant 0 : index
    %28 = vector.load %arg2[%c2, %c0_17, %c0_18] : memref<3x256x128xf32, #tpu.memory_space<vmem>>, vector<1x256x128xf32>
    %29 = vector.shape_cast %28 : vector<1x256x128xf32> to vector<256x128xf32>
    %cst_19 = arith.constant dense<0.000000e+00> : vector<8x128xf32>
    %30 = tpu.matmul %27, %29, %cst_19 {dimension_numbers = #tpu.dot_dimension_numbers<[1], [0], [0], [1], [0, 0, 1, 1], [], []>} : vector<8x256xf32>, vector<256x128xf32>, vector<8x128xf32> -> vector<8x128xf32>
    %c2_20 = arith.constant 2 : index
    %c0_21 = arith.constant 0 : index
    %c0_22 = arith.constant 0 : index
    %31 = vector.load %arg3[%c2_20, %c0_21, %c0_22] : memref<3x1x128xf32, #tpu.memory_space<vmem>>, vector<1x1x128xf32>
    %32 = vector.shape_cast %31 : vector<1x1x128xf32> to vector<1x128xf32>
    %33 = vector.broadcast %32 : vector<1x128xf32> to vector<8x128xf32>
    %34 = arith.addf %30, %33 : vector<8x128xf32>
    %35 = vector.extract_strided_slice %34 {offsets = [0, 0], sizes = [8, 16], strides = [1, 1]} : vector<8x128xf32> to vector<8x16xf32>
    %c0_23 = arith.constant 0 : index
    %c0_24 = arith.constant 0 : index
    %36 = vector.load %arg4[%c0_23, %c0_24] : memref<8x16xf32, #tpu.memory_space<vmem>>, vector<8x16xf32>
    tpu.vector_store %arg4[%c0_23, %c0_24], %35 {strides = array<i32>} : memref<8x16xf32, #tpu.memory_space<vmem>>, vector<8x16xf32>,
    return
  }
  func.func @transform_0(%arg0: i32) -> (i32, i32) {
    %c0_i32 = arith.constant 0 : i32
    %c0_i32_0 = arith.constant 0 : i32
    return %arg0, %c0_i32 : i32, i32
  }
  func.func @transform_1(%arg0: i32) -> (i32, i32, i32) {
    %c0_i32 = arith.constant 0 : i32
    %c0_i32_0 = arith.constant 0 : i32
    %c0_i32_1 = arith.constant 0 : i32
    %c0_i32_2 = arith.constant 0 : i32
    return %c0_i32, %c0_i32_0, %c0_i32_1 : i32, i32, i32
  }
  func.func @transform_2(%arg0: i32) -> (i32, i32, i32) {
    %c0_i32 = arith.constant 0 : i32
    %c0_i32_0 = arith.constant 0 : i32
    %c0_i32_1 = arith.constant 0 : i32
    %c0_i32_2 = arith.constant 0 : i32
    return %c0_i32, %c0_i32_0, %c0_i32_1 : i32, i32, i32
  }
  func.func @transform_3(%arg0: i32) -> (i32, i32) {
    %c0_i32 = arith.constant 0 : i32
    %c0_i32_0 = arith.constant 0 : i32
    return %arg0, %c0_i32 : i32, i32
  }
}

</mosaic_0001>

<llo_original>
// kernel: noise_injection_forward.1
$region0: #{noise_injection_forward.1}
  #allocation0 [shape = 'u32[]', space=smem, size = 0x4, offset = 0x4, fixed_abs, tag = 'smem constant byte address 0x4 - core index']
  #allocation1 [shape = 'u32[72,128]{1,0:T(1,128)}', space=vmem, size = 0x9000, scoped, tag = 'internal scratch']
  %s0 = inlined_call_operand.hbm [shape: f32[8,32], index: 0, kind: input, shape index: {}]
  %s1 = inlined_call_operand.hbm [shape: f32[3,256,128], index: 1, kind: input, shape index: {}]
  %s2 = inlined_call_operand.hbm [shape: f32[3,1,128], index: 2, kind: input, shape index: {}]
  %s3 = inlined_call_operand.hbm [shape: f32[8,16], index: 3, kind: output, shape index: {}]
  %s4 = sld [smem:[#allocation0]]
  $region34: #{noise_injection_forward.1} parent=0
    _
  %s6 = ssub.s32 1, %s4
  %s7 = scalar_select 0, %s6, %s4
  $region1: #{noise_injection_forward.1} parent=0
    #allocation2 [shape = 'u8[4096]{0}', space=vmem, size = 0x1000, scoped, tag = 'input window, operand 0, single buffered']
    #allocation3 [shape = 's32[1]{0}', space=sflag, size = 0x4, scoped, tag = 'scoped memory for noise_injection_forward.1']
    #allocation4 [shape = 's32[1]{0}', space=sflag, size = 0x4, scoped, tag = 'scoped memory for noise_injection_forward.1']
    #allocation5 [shape = 'u8[393216]{0}', space=vmem, size = 0x60000, scoped, tag = 'input window, operand 1, single buffered']
    #allocation6 [shape = 's32[1]{0}', space=sflag, size = 0x4, scoped, tag = 'scoped memory for noise_injection_forward.1']
    #allocation7 [shape = 'u8[1536]{0}', space=vmem, size = 0x800, scoped, tag = 'input window, operand 2, single buffered']
    #allocation8 [shape = 'u8[4096]{0}', space=vmem, size = 0x1000, scoped, tag = 'output window, operand 0, single buffered']
    %8 = vsyncpa [#allocation3], 0
    %9 = vsyncpa [#allocation6], 0
    %10 = vsyncpa [#allocation4], 0
    // Predicated region
    $region2: #{noise_injection_forward.1} parent=1 // pred_check
      _
    $region3: #{noise_injection_forward.1} parent=1 // pred_check_branch
      %12 = sbr.rel (0) target = $region5
    $region4: #{noise_injection_forward.1} parent=1 // pred_region
      %14 = vsyncadd [#allocation3], 0
      %s16 = sshll.u32 %s0, 4
      %s17 = int_to_ptr.hbm [resolvable:$true] %s16
      %s18 = sshll.u32 [#allocation2], 4
      %s19 = int_to_ptr.vmem [resolvable:$true] %s18
      %21 = dma.hbm_to_vmem [thread:$0]  %s17, 128, %s19, [#allocation3]
    $region5: #{noise_injection_forward.1} parent=1 // pred_fallthru
      _
    // Predicated region
    $region6: #{noise_injection_forward.1} parent=1 // pred_check
      _
    $region7: #{noise_injection_forward.1} parent=1 // pred_check_branch
      %23 = sbr.rel (0) target = $region9
    $region8: #{noise_injection_forward.1} parent=1 // pred_region
      %25 = vsyncadd [#allocation6], 0
      %s26 = sshll.u32 %s1, 4
      %s27 = int_to_ptr.hbm [resolvable:$true] %s26
      %s28 = sshll.u32 [#allocation5], 4
      %s29 = int_to_ptr.vmem [resolvable:$true] %s28
      %34 = dma.hbm_to_vmem [thread:$0]  %s27, 12288, %s29, [#allocation6], 128, 128, 8
    $region9: #{noise_injection_forward.1} parent=1 // pred_fallthru
      _
    // Predicated region
    $region10: #{noise_injection_forward.1} parent=1 // pred_check
      _
    $region11: #{noise_injection_forward.1} parent=1 // pred_check_branch
      %36 = sbr.rel (0) target = $region13
    $region12: #{noise_injection_forward.1} parent=1 // pred_region
      %38 = vsyncadd [#allocation6], 0
      %s39 = sshll.u32 %s2, 4
      %s40 = int_to_ptr.hbm [resolvable:$true] %s39
      %s41 = sshll.u32 [#allocation7], 4
      %s42 = int_to_ptr.vmem [resolvable:$true] %s41
      %47 = dma.hbm_to_vmem [thread:$0]  %s40, 48, %s42, [#allocation6], 16, 16, 1
    $region13: #{noise_injection_forward.1} parent=1 // pred_fallthru
      _
    // Predicated region
    $region14: #{noise_injection_forward.1} parent=1 // pred_check
      _
    $region15: #{noise_injection_forward.1} parent=1 // pred_check_branch
      %49 = sbr.rel (0) target = $region17
    $region16: #{noise_injection_forward.1} parent=1 // pred_region
      %51 = dma.done [#allocation3], 128
    $region17: #{noise_injection_forward.1} parent=1 // pred_fallthru
      _
    // Predicated region
    $region18: #{noise_injection_forward.1} parent=1 // pred_check
      _
    $region19: #{noise_injection_forward.1} parent=1 // pred_check_branch
      %53 = sbr.rel (0) target = $region21
    $region20: #{noise_injection_forward.1} parent=1 // pred_region
      %55 = dma.done [#allocation6], 12288
    $region21: #{noise_injection_forward.1} parent=1 // pred_fallthru
      _
    // Predicated region
    $region22: #{noise_injection_forward.1} parent=1 // pred_check
      _
    $region23: #{noise_injection_forward.1} parent=1 // pred_check_branch
      %57 = sbr.rel (0) target = $region25
    $region24: #{noise_injection_forward.1} parent=1 // pred_region
      %59 = dma.done [#allocation6], 48
    $region25: #{noise_injection_forward.1} parent=1 // pred_fallthru
      _
    %v60 = vld [vmem:[#allocation2] sm:$0xff]
    %vm61 = vcmask 195584
    %v62 = vsel %vm61, %v60, 0.0
    %64 = vrot.lane.b32.xlu0 %v60, 104
    %v65 = vpop.permute.xlu0 %64
    %vm67 = vcmask 64512
    %v68 = vsel %vm67, %v65, 0.0
    %v69 = vld [vmem:[#allocation5] sm:$0xff]
    %v70 = vld [vmem:[#allocation5 + $0x8] sm:$0xff]
    %v71 = vld [vmem:[#allocation5 + $0x10] sm:$0xff]
    %v72 = vld [vmem:[#allocation5 + $0x18] sm:$0xff]
    %v73 = vld [vmem:[#allocation5 + $0x20] sm:$0xff]
    %v74 = vld [vmem:[#allocation5 + $0x28] sm:$0xff]
    %v75 = vld [vmem:[#allocation5 + $0x30] sm:$0xff]
    %v76 = vld [vmem:[#allocation5 + $0x38] sm:$0xff]
    %v77 = vld [vmem:[#allocation5 + $0x40] sm:$0xff]
    %v78 = vld [vmem:[#allocation5 + $0x48] sm:$0xff]
    %v79 = vld [vmem:[#allocation5 + $0x50] sm:$0xff]
    %v80 = vld [vmem:[#allocation5 + $0x58] sm:$0xff]
    %v81 = vld [vmem:[#allocation5 + $0x60] sm:$0xff]
    %v82 = vld [vmem:[#allocation5 + $0x68] sm:$0xff]
    %v83 = vld [vmem:[#allocation5 + $0x70] sm:$0xff]
    %v84 = vld [vmem:[#allocation5 + $0x78] sm:$0xff]
    %v85 = vld [vmem:[#allocation5 + $0x80] sm:$0xff]
    %v86 = vld [vmem:[#allocation5 + $0x88] sm:$0xff]
    %v87 = vld [vmem:[#allocation5 + $0x90] sm:$0xff]
    %v88 = vld [vmem:[#allocation5 + $0x98] sm:$0xff]
    %v89 = vld [vmem:[#allocation5 + $0xa0] sm:$0xff]
    %v90 = vld [vmem:[#allocation5 + $0xa8] sm:$0xff]
    %v91 = vld [vmem:[#allocation5 + $0xb0] sm:$0xff]
    %v92 = vld [vmem:[#allocation5 + $0xb8] sm:$0xff]
    %v93 = vld [vmem:[#allocation5 + $0xc0] sm:$0xff]
    %v94 = vld [vmem:[#allocation5 + $0xc8] sm:$0xff]
    %v95 = vld [vmem:[#allocation5 + $0xd0] sm:$0xff]
    %v96 = vld [vmem:[#allocation5 + $0xd8] sm:$0xff]
    %v97 = vld [vmem:[#allocation5 + $0xe0] sm:$0xff]
    %v98 = vld [vmem:[#allocation5 + $0xe8] sm:$0xff]
    %v99 = vld [vmem:[#allocation5 + $0xf0] sm:$0xff]
    %v100 = vld [vmem:[#allocation5 + $0xf8] sm:$0xff]
    %v101 = vld [vmem:[#allocation7] sm:$0x1]
    %v103 = vperm.slane %v101, 0
    %105 = vmatpush.msra.mxu0 %v84
    %106 = vmatpush.msra.mxu0 %v83
    %107 = vmatpush.msra.mxu0 %v82
    %108 = vmatpush.msra.mxu0 %v81
    %109 = vmatpush.msra.mxu0 %v80
    %110 = vmatpush.msra.mxu0 %v79
    %111 = vmatpush.msra.mxu0 %v78
    %112 = vmatpush.msra.mxu0 %v77
    %113 = vmatpush.msra.mxu0 %v76
    %114 = vmatpush.msra.mxu0 %v75
    %115 = vmatpush.msra.mxu0 %v74
    %116 = vmatpush.msra.mxu0 %v73
    %117 = vmatpush.msra.mxu0 %v72
    %118 = vmatpush.msra.mxu0 %v71
    %119 = vmatpush.msra.mxu0 %v70
    %120 = vmatpush.msra.mxu0 %v69
    %121 = vmatmul.f32.gmra.mxu0 %v62
    %v122 = vpop.f32.mrf.mxu0
    %v123 = vadd.f32 %v103, %v122
    %124 = vdwg.mxu0
    %125 = vmatpush.msra.mxu0 %v100
    %126 = vmatpush.msra.mxu0 %v99
    %127 = vmatpush.msra.mxu0 %v98
    %128 = vmatpush.msra.mxu0 %v97
    %129 = vmatpush.msra.mxu0 %v96
    %130 = vmatpush.msra.mxu0 %v95
    %131 = vmatpush.msra.mxu0 %v94
    %132 = vmatpush.msra.mxu0 %v93
    %133 = vmatpush.msra.mxu0 %v92
    %134 = vmatpush.msra.mxu0 %v91
    %135 = vmatpush.msra.mxu0 %v90
    %136 = vmatpush.msra.mxu0 %v89
    %137 = vmatpush.msra.mxu0 %v88
    %138 = vmatpush.msra.mxu0 %v87
    %139 = vmatpush.msra.mxu0 %v86
    %140 = vmatpush.msra.mxu0 %v85
    %141 = vmatmul.f32.gmra.mxu0 %v68
    %v142 = vpop.f32.mrf.mxu0
    %v143 = vadd.f32 %v123, %v142
    %144 = vdwg.mxu0
    %v145 = vmax.f32 %v143, 0.0
    %s146 = scalar_lea.vmem [#allocation5], 256
    %v147 = vld [vmem:[%s146] sm:$0xff]
    %v148 = vld [vmem:[%s146 + $0x8] sm:$0xff]
    %v149 = vld [vmem:[%s146 + $0x10] sm:$0xff]
    %v150 = vld [vmem:[%s146 + $0x18] sm:$0xff]
    %v151 = vld [vmem:[%s146 + $0x20] sm:$0xff]
    %v152 = vld [vmem:[%s146 + $0x28] sm:$0xff]
    %v153 = vld [vmem:[%s146 + $0x30] sm:$0xff]
    %v154 = vld [vmem:[%s146 + $0x38] sm:$0xff]
    %v155 = vld [vmem:[%s146 + $0x40] sm:$0xff]
    %v156 = vld [vmem:[%s146 + $0x48] sm:$0xff]
    %v157 = vld [vmem:[%s146 + $0x50] sm:$0xff]
    %v158 = vld [vmem:[%s146 + $0x58] sm:$0xff]
    %v159 = vld [vmem:[%s146 + $0x60] sm:$0xff]
    %v160 = vld [vmem:[%s146 + $0x68] sm:$0xff]
    %v161 = vld [vmem:[%s146 + $0x70] sm:$0xff]
    %v162 = vld [vmem:[%s146 + $0x78] sm:$0xff]
    %v163 = vld [vmem:[%s146 + $0x80] sm:$0xff]
    %v164 = vld [vmem:[%s146 + $0x88] sm:$0xff]
    %v165 = vld [vmem:[%s146 + $0x90] sm:$0xff]
    %v166 = vld [vmem:[%s146 + $0x98] sm:$0xff]
    %v167 = vld [vmem:[%s146 + $0xa0] sm:$0xff]
    %v168 = vld [vmem:[%s146 + $0xa8] sm:$0xff]
    %v169 = vld [vmem:[%s146 + $0xb0] sm:$0xff]
    %v170 = vld [vmem:[%s146 + $0xb8] sm:$0xff]
    %v171 = vld [vmem:[%s146 + $0xc0] sm:$0xff]
    %v172 = vld [vmem:[%s146 + $0xc8] sm:$0xff]
    %v173 = vld [vmem:[%s146 + $0xd0] sm:$0xff]
    %v174 = vld [vmem:[%s146 + $0xd8] sm:$0xff]
    %v175 = vld [vmem:[%s146 + $0xe0] sm:$0xff]
    %v176 = vld [vmem:[%s146 + $0xe8] sm:$0xff]
    %v177 = vld [vmem:[%s146 + $0xf0] sm:$0xff]
    %v178 = vld [vmem:[%s146 + $0xf8] sm:$0xff]
    %s179 = scalar_lea.vmem [#allocation7], 1
    %v180 = vld [vmem:[%s179] sm:$0x1]
    %v182 = vperm.slane %v180, 0
    %184 = vmatpush.msra.mxu0 %v162
    %185 = vmatpush.msra.mxu0 %v161
    %186 = vmatpush.msra.mxu0 %v160
    %187 = vmatpush.msra.mxu0 %v159
    %188 = vmatpush.msra.mxu0 %v158
    %189 = vmatpush.msra.mxu0 %v157
    %190 = vmatpush.msra.mxu0 %v156
    %191 = vmatpush.msra.mxu0 %v155
    %192 = vmatpush.msra.mxu0 %v154
    %193 = vmatpush.msra.mxu0 %v153
    %194 = vmatpush.msra.mxu0 %v152
    %195 = vmatpush.msra.mxu0 %v151
    %196 = vmatpush.msra.mxu0 %v150
    %197 = vmatpush.msra.mxu0 %v149
    %198 = vmatpush.msra.mxu0 %v148
    %199 = vmatpush.msra.mxu0 %v147
    %200 = vmatmul.f32.gmra.mxu0 %v145
    %v201 = vpop.f32.mrf.mxu0
    %v202 = vadd.f32 %v182, %v201
    %203 = vdwg.mxu0
    %204 = vmatpush.msra.mxu0 %v178
    %205 = vmatpush.msra.mxu0 %v177
    %206 = vmatpush.msra.mxu0 %v176
    %207 = vmatpush.msra.mxu0 %v175
    %208 = vmatpush.msra.mxu0 %v174
    %209 = vmatpush.msra.mxu0 %v173
    %210 = vmatpush.msra.mxu0 %v172
    %211 = vmatpush.msra.mxu0 %v171
    %212 = vmatpush.msra.mxu0 %v170
    %213 = vmatpush.msra.mxu0 %v169
    %214 = vmatpush.msra.mxu0 %v168
    %215 = vmatpush.msra.mxu0 %v167
    %216 = vmatpush.msra.mxu0 %v166
    %217 = vmatpush.msra.mxu0 %v165
    %218 = vmatpush.msra.mxu0 %v164
    %219 = vmatpush.msra.mxu0 %v163
    %220 = vmatmul.f32.gmra.mxu0 %v68
    %v221 = vpop.f32.mrf.mxu0
    %v222 = vadd.f32 %v202, %v221
    %223 = vdwg.mxu0
    %v224 = vmax.f32 %v222, 0.0
    %s225 = scalar_lea.vmem [#allocation5], 512
    %v226 = vld [vmem:[%s225] sm:$0xff]
    %v227 = vld [vmem:[%s225 + $0x8] sm:$0xff]
    %v228 = vld [vmem:[%s225 + $0x10] sm:$0xff]
    %v229 = vld [vmem:[%s225 + $0x18] sm:$0xff]
    %v230 = vld [vmem:[%s225 + $0x20] sm:$0xff]
    %v231 = vld [vmem:[%s225 + $0x28] sm:$0xff]
    %v232 = vld [vmem:[%s225 + $0x30] sm:$0xff]
    %v233 = vld [vmem:[%s225 + $0x38] sm:$0xff]
    %v234 = vld [vmem:[%s225 + $0x40] sm:$0xff]
    %v235 = vld [vmem:[%s225 + $0x48] sm:$0xff]
    %v236 = vld [vmem:[%s225 + $0x50] sm:$0xff]
    %v237 = vld [vmem:[%s225 + $0x58] sm:$0xff]
    %v238 = vld [vmem:[%s225 + $0x60] sm:$0xff]
    %v239 = vld [vmem:[%s225 + $0x68] sm:$0xff]
    %v240 = vld [vmem:[%s225 + $0x70] sm:$0xff]
    %v241 = vld [vmem:[%s225 + $0x78] sm:$0xff]
    %v242 = vld [vmem:[%s225 + $0x80] sm:$0xff]
    %v243 = vld [vmem:[%s225 + $0x88] sm:$0xff]
    %v244 = vld [vmem:[%s225 + $0x90] sm:$0xff]
    %v245 = vld [vmem:[%s225 + $0x98] sm:$0xff]
    %v246 = vld [vmem:[%s225 + $0xa0] sm:$0xff]
    %v247 = vld [vmem:[%s225 + $0xa8] sm:$0xff]
    %v248 = vld [vmem:[%s225 + $0xb0] sm:$0xff]
    %v249 = vld [vmem:[%s225 + $0xb8] sm:$0xff]
    %v250 = vld [vmem:[%s225 + $0xc0] sm:$0xff]
    %v251 = vld [vmem:[%s225 + $0xc8] sm:$0xff]
    %v252 = vld [vmem:[%s225 + $0xd0] sm:$0xff]
    %v253 = vld [vmem:[%s225 + $0xd8] sm:$0xff]
    %v254 = vld [vmem:[%s225 + $0xe0] sm:$0xff]
    %v255 = vld [vmem:[%s225 + $0xe8] sm:$0xff]
    %v256 = vld [vmem:[%s225 + $0xf0] sm:$0xff]
    %v257 = vld [vmem:[%s225 + $0xf8] sm:$0xff]
    %s258 = scalar_lea.vmem [#allocation7], 2
    %v259 = vld [vmem:[%s258] sm:$0x1]
    %v261 = vperm.slane %v259, 0
    %263 = vmatpush.msra.mxu0 %v241
    %264 = vmatpush.msra.mxu0 %v240
    %265 = vmatpush.msra.mxu0 %v239
    %266 = vmatpush.msra.mxu0 %v238
    %267 = vmatpush.msra.mxu0 %v237
    %268 = vmatpush.msra.mxu0 %v236
    %269 = vmatpush.msra.mxu0 %v235
    %270 = vmatpush.msra.mxu0 %v234
    %271 = vmatpush.msra.mxu0 %v233
    %272 = vmatpush.msra.mxu0 %v232
    %273 = vmatpush.msra.mxu0 %v231
    %274 = vmatpush.msra.mxu0 %v230
    %275 = vmatpush.msra.mxu0 %v229
    %276 = vmatpush.msra.mxu0 %v228
    %277 = vmatpush.msra.mxu0 %v227
    %278 = vmatpush.msra.mxu0 %v226
    %279 = vmatmul.f32.gmra.mxu0 %v224
    %v280 = vpop.f32.mrf.mxu0
    %v281 = vadd.f32 %v261, %v280
    %282 = vdwg.mxu0
    %283 = vmatpush.msra.mxu0 %v257
    %284 = vmatpush.msra.mxu0 %v256
    %285 = vmatpush.msra.mxu0 %v255
    %286 = vmatpush.msra.mxu0 %v254
    %287 = vmatpush.msra.mxu0 %v253
    %288 = vmatpush.msra.mxu0 %v252
    %289 = vmatpush.msra.mxu0 %v251
    %290 = vmatpush.msra.mxu0 %v250
    %291 = vmatpush.msra.mxu0 %v249
    %292 = vmatpush.msra.mxu0 %v248
    %293 = vmatpush.msra.mxu0 %v247
    %294 = vmatpush.msra.mxu0 %v246
    %295 = vmatpush.msra.mxu0 %v245
    %296 = vmatpush.msra.mxu0 %v244
    %297 = vmatpush.msra.mxu0 %v243
    %298 = vmatpush.msra.mxu0 %v242
    %299 = vmatmul.f32.gmra.mxu0 %v68
    %v300 = vpop.f32.mrf.mxu0
    %v301 = vadd.f32 %v281, %v300
    %302 = vdwg.mxu0
    %vm303 = vcmask 130048
    %304 = vst.msk [vmem:[#allocation8] sm:$0xff] %vm303, %v301
    // Predicated region
    $region26: #{noise_injection_forward.1} parent=1 // pred_check
      _
    $region27: #{noise_injection_forward.1} parent=1 // pred_check_branch
      %306 = sbr.rel (0) target = $region29
    $region28: #{noise_injection_forward.1} parent=1 // pred_region
      %308 = vsyncadd [#allocation4], 0
      %s310 = sshll.u32 [#allocation8], 4
      %s311 = int_to_ptr.vmem [resolvable:$true] %s310
      %s312 = sshll.u32 %s3, 4
      %s313 = int_to_ptr.hbm [resolvable:$true] %s312
      %315 = dma.vmem_to_hbm [thread:$0]  %s311, 128, %s313, [#allocation4]
    $region29: #{noise_injection_forward.1} parent=1 // pred_fallthru
      _
    // Predicated region
    $region30: #{noise_injection_forward.1} parent=1 // pred_check
      _
    $region31: #{noise_injection_forward.1} parent=1 // pred_check_branch
      %317 = sbr.rel (0) target = $region33
    $region32: #{noise_injection_forward.1} parent=1 // pred_region
      %319 = dma.done [#allocation4], 128
    $region33: #{noise_injection_forward.1} parent=1 // pred_fallthru
      _
    %320 = vsyncpa [#allocation3], 1
    %321 = vsyncpa [#allocation6], 1
    %322 = vsyncpa [#allocation4], 1

</llo_original>
